<compile_context>
chip_gen: v7x
topology: tpu7x:2x2x1
jax: 0.10.0
libtpu: 0.0.40
codegen_flags: <defaults>
</compile_context>

<pallas_src>
import functools

import jax
import jax.numpy as jnp
from jax import lax
from jax.experimental import pallas as pl
from jax.experimental.pallas import tpu as pltpu


def _recip_f32(x):
    """~f32-accurate reciprocal: approx EUP vrcp + one Newton refinement step."""
    r = pl.reciprocal(x, approx=True)
    return r * (2.0 - x * r)


def dec_kernel(x_ref, w1_ref, w2_ref, w3_ref, aux_ref, out_ref, *,
               alpha, n_clusters, latent_dim, h1_dim, h2_dim):
    # x_ref: (tb, F) natural layout (compute dtype); w*_ref: (out, in) compute dtype.
    # aux_ref (f32) packs, as columns: b1 | b2 | b3 | centres^T (D, K).
    b1 = aux_ref[0:h1_dim, 0:1]                          # (H1, 1)
    b2 = aux_ref[0:h2_dim, 1:2]                          # (H2, 1)
    b3 = aux_ref[0:latent_dim, 2:3]                      # (D, 1)
    cT = aux_ref[0:latent_dim, 3:3 + n_clusters]         # (D, K)

    # ---- encoder ----
    # First matmul contracts the feature axis of the natural-layout x tile; the "trans-B"
    # is absorbed at MXU feed / a cheap vxpose on the otherwise-idle XLU.  Result is
    # (H1, tb): batch on the 128-lane axis for the rest of the kernel.
    h1 = lax.dot_general(w1_ref[...], x_ref[...], (((1,), (1,)), ((), ())),
                         preferred_element_type=jnp.float32) + b1          # (H1, tb) f32
    h1 = jnp.maximum(h1, 0.0).astype(w2_ref.dtype)
    h2 = jnp.dot(w2_ref[...], h1, preferred_element_type=jnp.float32) + b2  # (H2, tb) f32
    h2 = jnp.maximum(h2, 0.0).astype(w3_ref.dtype)
    z = jnp.dot(w3_ref[...], h2, preferred_element_type=jnp.float32) + b3   # (D,  tb) f32

    # ---- Student-t soft assignment ----
    kd = n_clusters * latent_dim
    power = -(alpha + 1.0) / 2.0

    if alpha == 1.0 and n_clusters == 2:
        # prob_0 = base1/(base0+base1), prob_1 = base0/(base0+base1): single reciprocal.
        d0 = z - cT[:, 0:1]
        d1 = z - cT[:, 1:2]
        base0 = 1.0 + d0 * d0
        base1 = 1.0 + d1 * d1
        inv = _recip_f32(base0 + base1)
        out_ref[0:latent_dim, :] = base1 * inv
        out_ref[latent_dim:2 * latent_dim, :] = base0 * inv
    else:
        inv_alpha = 1.0 / alpha
        sts = []
        for k in range(n_clusters):
            diff = z - cT[:, k:k + 1]
            base = 1.0 + (diff * diff) * inv_alpha       # >= 1 always
            if power == -1.0:
                st = _recip_f32(base)
            else:
                st = jnp.exp(power * jnp.log(base))      # general non-integer power
            sts.append(st)
        denom = sts[0]
        for k in range(1, n_clusters):
            denom = denom + sts[k]
        inv = _recip_f32(denom)
        for k in range(n_clusters):
            out_ref[k * latent_dim:(k + 1) * latent_dim, :] = sts[k] * inv

    # zero the sublane padding rows (stripped by the wrapper)
    pad_rows = out_ref.shape[0] - kd
    if pad_rows:
        out_ref[kd:, :] = jnp.zeros((pad_rows, out_ref.shape[1]), jnp.float32)


def dec_forward(x, params, cluster_centres, alpha, *, tb=2048,
                compute_dtype=jnp.bfloat16):
    """x: (N, F); weights PyTorch-Linear style as (in, out), biases (1, out).

    Returns (N, K, D) soft-assignment probabilities (matches the PyTorch module).
    `compute_dtype` is the MXU input dtype (bf16 halves the dominant HBM read on
    v5e/v6e/v7x); all post-matmul math stays f32.
    """
    w1, b1, w2, b2, w3, b3 = params
    N, F = x.shape
    K, D = cluster_centres.shape
    H1, H2 = w1.shape[1], w2.shape[1]
    alpha = float(alpha)

    # ---- batch tiling: big lane-dense tiles, but always >= 2 grid steps (v7x megacore)
    tb = int(tb)
    assert tb % 128 == 0, "batch tile must be a multiple of 128 lanes"
    if pl.cdiv(N, tb) < 2:
        tb = max(128, int(pl.cdiv(pl.cdiv(N, 2), 128)) * 128)
    num_tiles = max(2, int(pl.cdiv(N, tb)))
    n_pad = num_tiles * tb
    if n_pad != N:
        # padded rows are computed then discarded (base >= 1, so never NaN/Inf)
        x = jnp.pad(x, ((0, n_pad - N), (0, 0)))

    # ---- operands: natural-layout x (no wrapper transpose), bf16 matmul inputs
    x_in = x.astype(compute_dtype)                       # (n_pad, F)
    w1T = w1.T.astype(compute_dtype)                     # (H1, F)
    w2T = w2.T.astype(compute_dtype)                     # (H2, H1)
    w3T = w3.T.astype(compute_dtype)                     # (D,  H2)

    # biases + centres fused into one small f32 operand (columns: b1 | b2 | b3 | centres^T)
    aux_rows = max(H1, H2, D)
    aux = jnp.zeros((aux_rows, 3 + K), jnp.float32)
    aux = aux.at[:H1, 0].set(jnp.reshape(b1, (-1,)).astype(jnp.float32))
    aux = aux.at[:H2, 1].set(jnp.reshape(b2, (-1,)).astype(jnp.float32))
    aux = aux.at[:D, 2].set(jnp.reshape(b3, (-1,)).astype(jnp.float32))
    aux = aux.at[:D, 3:3 + K].set(cluster_centres.T.astype(jnp.float32))

    kd = K * D
    kd_pad = int(pl.cdiv(kd, 8)) * 8                     # full-sublane output rows

    kernel = functools.partial(dec_kernel, alpha=alpha, n_clusters=int(K),
                               latent_dim=int(D), h1_dim=int(H1), h2_dim=int(H2))

    in_itemsize = jnp.dtype(compute_dtype).itemsize
    cost = pl.CostEstimate(
        flops=2 * n_pad * (F * H1 + H1 * H2 + H2 * D) + 8 * n_pad * kd,
        transcendentals=0 if alpha == 1.0 else n_pad * kd,
        bytes_accessed=(n_pad * F * in_itemsize
                        + (w1T.size + w2T.size + w3T.size) * in_itemsize
                        + aux.size * 4
                        + kd_pad * n_pad * 4),
    )

    # Explicit VMEM budget: double-buffered lane-padded x tile + out tile + intermediates.
    # (v5e default scoped VMEM is only 16 MiB; v7x physical VMEM is 64 MiB.)
    x_tile_vmem = tb * max(128, F) * in_itemsize
    out_tile_vmem = kd_pad * tb * 4
    vmem_limit = int(min(48 << 20, max(24 << 20, 8 * (x_tile_vmem + out_tile_vmem))))

    out_kdn = pl.pallas_call(
        kernel,
        out_shape=jax.ShapeDtypeStruct((kd_pad, n_pad), jnp.float32),
        grid=(num_tiles,),
        in_specs=[
            pl.BlockSpec((tb, F), lambda i: (i, 0)),      # natural-layout x tile
            pl.BlockSpec(w1T.shape, lambda i: (0, 0)),    # weights broadcast across steps
            pl.BlockSpec(w2T.shape, lambda i: (0, 0)),
            pl.BlockSpec(w3T.shape, lambda i: (0, 0)),
            pl.BlockSpec(aux.shape, lambda i: (0, 0)),    # fused biases + centres
        ],
        out_specs=pl.BlockSpec((kd_pad, tb), lambda i: (0, i)),  # lane-dense output slab
        compiler_params=pltpu.CompilerParams(
            dimension_semantics=("parallel",),
            vmem_limit_bytes=vmem_limit),
        cost_estimate=cost,
    )(x_in, w1T, w2T, w3T, aux)

    out = out_kdn[:kd, :N]                   # strip sublane + batch padding
    # TODO(synk): if the downstream consumer can take the (K*D, N) slab directly,
    # skip this transpose and fold the reshape into that consumer.
    return jnp.transpose(out, (1, 0)).reshape(N, K, D)


def ref_forward(x, params, centres, alpha, compute_dtype=jnp.float32):
    """Pure-JAX reference mirroring the PyTorch semantics (optionally bf16 MXU inputs)."""
    w1, b1, w2, b2, w3, b3 = params
    cd = compute_dtype
    h1 = jax.nn.relu(jnp.dot(x.astype(cd), w1.astype(cd),
                             preferred_element_type=jnp.float32) + b1)
    h2 = jax.nn.relu(jnp.dot(h1.astype(cd), w2.astype(cd),
                             preferred_element_type=jnp.float32) + b2)
    z = jnp.dot(h2.astype(cd), w3.astype(cd),
                preferred_element_type=jnp.float32) + b3
    dist = (z[:, None, :] - centres[None, :, :]) ** 2
    power = -(alpha + 1.0) / 2.0
    st = (1.0 + dist / alpha) ** power
    return st / jnp.sum(st, axis=1, keepdims=True)


if __name__ == "__main__":
    # small, deterministic synthetic setup consistent with the module:
    #   hidden_layers = [21, 36, 3], K = 2 clusters, alpha = 1.0
    N, F = 256, 16
    hidden = (21, 36, 3)
    K, D = 2, hidden[-1]
    alpha = 1.0

    key = jax.random.PRNGKey(0)
    ks = jax.random.split(key, 8)
    w1 = jax.random.normal(ks[0], (F, hidden[0]), jnp.float32) * 0.2
    b1 = jax.random.normal(ks[1], (1, hidden[0]), jnp.float32) * 0.05
    w2 = jax.random.normal(ks[2], (hidden[0], hidden[1]), jnp.float32) * 0.2
    b2 = jax.random.normal(ks[3], (1, hidden[1]), jnp.float32) * 0.05
    w3 = jax.random.normal(ks[4], (hidden[1], hidden[2]), jnp.float32) * 0.2
    b3 = jax.random.normal(ks[5], (1, hidden[2]), jnp.float32) * 0.05
    centres = jax.random.normal(ks[6], (K, D), jnp.float32)
    x = jax.random.uniform(ks[7], (N, F), jnp.float32)

    params = (w1, b1, w2, b2, w3, b3)

    # f32 path: exact PyTorch-precision numerics
    out_f32 = jax.block_until_ready(
        dec_forward(x, params, centres, alpha, compute_dtype=jnp.float32))
    exp_f32 = ref_forward(x, params, centres, alpha, jnp.float32)
    assert out_f32.shape == (N, K, D), out_f32.shape
    assert jnp.allclose(out_f32, exp_f32, rtol=1e-4, atol=1e-5), \
        f"f32 max err {jnp.max(jnp.abs(out_f32 - exp_f32))}"

    # default bf16-matmul-input path (halves the dominant HBM read) vs a matched reference
    out_bf16 = jax.block_until_ready(dec_forward(x, params, centres, alpha))
    exp_bf16 = ref_forward(x, params, centres, alpha, jnp.bfloat16)
    assert out_bf16.shape == (N, K, D), out_bf16.shape
    assert jnp.allclose(out_bf16, exp_bf16, rtol=2e-3, atol=2e-4), \
        f"bf16 max err {jnp.max(jnp.abs(out_bf16 - exp_bf16))}"

    print("KERNEL_OK")
</pallas_src>

<mosaic_0001>
module attributes {stable_mosaic.version = 11 : i64} {
  func.func @dec_kernel(%arg0: i32, %arg1: memref<128x16xf32, #tpu.memory_space<vmem>>, %arg2: memref<21x16xf32, #tpu.memory_space<vmem>>, %arg3: memref<36x21xf32, #tpu.memory_space<vmem>>, %arg4: memref<3x36xf32, #tpu.memory_space<vmem>>, %arg5: memref<36x5xf32, #tpu.memory_space<vmem>>, %arg6: memref<8x128xf32, #tpu.memory_space<vmem>>) attributes {dimension_semantics = [#tpu.dimension_semantics<parallel>], iteration_bounds = array<i64: 2>, scalar_prefetch = 0 : i64, scratch_operands = 0 : i64, tpu.core_type = #tpu.core_type<tc>, window_params = [{transform_indices = @transform_0, window_bounds = array<i64: 128, 16>}, {pipeline_mode = #tpu.pipeline_mode<synchronous>, transform_indices = @transform_1, window_bounds = array<i64: 21, 16>}, {pipeline_mode = #tpu.pipeline_mode<synchronous>, transform_indices = @transform_2, window_bounds = array<i64: 36, 21>}, {pipeline_mode = #tpu.pipeline_mode<synchronous>, transform_indices = @transform_3, window_bounds = array<i64: 3, 36>}, {pipeline_mode = #tpu.pipeline_mode<synchronous>, transform_indices = @transform_4, window_bounds = array<i64: 36, 5>}, {transform_indices = @transform_5, window_bounds = array<i64: 8, 128>}]} {
    %c0 = arith.constant 0 : index
    %c0_0 = arith.constant 0 : index
    %0 = vector.load %arg5[%c0, %c0_0] : memref<36x5xf32, #tpu.memory_space<vmem>>, vector<21x1xf32>
    %c0_1 = arith.constant 0 : index
    %c1 = arith.constant 1 : index
    %1 = vector.load %arg5[%c0_1, %c1] : memref<36x5xf32, #tpu.memory_space<vmem>>, vector<36x1xf32>
    %c0_2 = arith.constant 0 : index
    %c2 = arith.constant 2 : index
    %2 = vector.load %arg5[%c0_2, %c2] : memref<36x5xf32, #tpu.memory_space<vmem>>, vector<3x1xf32>
    %c0_3 = arith.constant 0 : index
    %c3 = arith.constant 3 : index
    %3 = vector.load %arg5[%c0_3, %c3] : memref<36x5xf32, #tpu.memory_space<vmem>>, vector<3x2xf32>
    %c0_4 = arith.constant 0 : index
    %c0_5 = arith.constant 0 : index
    %4 = vector.load %arg2[%c0_4, %c0_5] : memref<21x16xf32, #tpu.memory_space<vmem>>, vector<21x16xf32>
    %c0_6 = arith.constant 0 : index
    %c0_7 = arith.constant 0 : index
    %5 = vector.load %arg1[%c0_6, %c0_7] : memref<128x16xf32, #tpu.memory_space<vmem>>, vector<128x16xf32>
    %cst = arith.constant dense<0.000000e+00> : vector<21x128xf32>
    %6 = tpu.matmul %4, %5, %cst {dimension_numbers = #tpu.dot_dimension_numbers<[1], [1], [0], [0], [0, 0, 1, 0], [], []>} : vector<21x16xf32>, vector<128x16xf32>, vector<21x128xf32> -> vector<21x128xf32>
    %7 = vector.broadcast %0 : vector<21x1xf32> to vector<21x128xf32>
    %8 = arith.addf %6, %7 : vector<21x128xf32>
    %cst_8 = arith.constant 0.000000e+00 : f32
    %9 = vector.broadcast %cst_8 : f32 to vector<21x128xf32>
    %10 = arith.maximumf %8, %9 : vector<21x128xf32>
    %c0_9 = arith.constant 0 : index
    %c0_10 = arith.constant 0 : index
    %11 = vector.load %arg3[%c0_9, %c0_10] : memref<36x21xf32, #tpu.memory_space<vmem>>, vector<36x21xf32>
    %cst_11 = arith.constant dense<0.000000e+00> : vector<36x128xf32>
    %12 = tpu.matmul %11, %10, %cst_11 {dimension_numbers = #tpu.dot_dimension_numbers<[1], [0], [0], [1], [0, 0, 1, 1], [], []>} : vector<36x21xf32>, vector<21x128xf32>, vector<36x128xf32> -> vector<36x128xf32>
    %13 = vector.broadcast %1 : vector<36x1xf32> to vector<36x128xf32>
    %14 = arith.addf %12, %13 : vector<36x128xf32>
    %cst_12 = arith.constant 0.000000e+00 : f32
    %15 = vector.broadcast %cst_12 : f32 to vector<36x128xf32>
    %16 = arith.maximumf %14, %15 : vector<36x128xf32>
    %c0_13 = arith.constant 0 : index
    %c0_14 = arith.constant 0 : index
    %17 = vector.load %arg4[%c0_13, %c0_14] : memref<3x36xf32, #tpu.memory_space<vmem>>, vector<3x36xf32>
    %cst_15 = arith.constant dense<0.000000e+00> : vector<3x128xf32>
    %18 = tpu.matmul %17, %16, %cst_15 {dimension_numbers = #tpu.dot_dimension_numbers<[1], [0], [0], [1], [0, 0, 1, 1], [], []>} : vector<3x36xf32>, vector<36x128xf32>, vector<3x128xf32> -> vector<3x128xf32>
    %19 = vector.broadcast %2 : vector<3x1xf32> to vector<3x128xf32>
    %20 = arith.addf %18, %19 : vector<3x128xf32>
    %21 = vector.extract_strided_slice %3 {offsets = [0, 0], sizes = [3, 1], strides = [1, 1]} : vector<3x2xf32> to vector<3x1xf32>
    %22 = vector.broadcast %21 : vector<3x1xf32> to vector<3x128xf32>
    %23 = arith.subf %20, %22 : vector<3x128xf32>
    %24 = vector.extract_strided_slice %3 {offsets = [0, 1], sizes = [3, 1], strides = [1, 1]} : vector<3x2xf32> to vector<3x1xf32>
    %25 = vector.broadcast %24 : vector<3x1xf32> to vector<3x128xf32>
    %26 = arith.subf %20, %25 : vector<3x128xf32>
    %27 = arith.mulf %23, %23 : vector<3x128xf32>
    %cst_16 = arith.constant 1.000000e+00 : f32
    %28 = vector.broadcast %cst_16 : f32 to vector<3x128xf32>
    %29 = arith.addf %28, %27 : vector<3x128xf32>
    %30 = arith.mulf %26, %26 : vector<3x128xf32>
    %cst_17 = arith.constant 1.000000e+00 : f32
    %31 = vector.broadcast %cst_17 : f32 to vector<3x128xf32>
    %32 = arith.addf %31, %30 : vector<3x128xf32>
    %33 = arith.addf %29, %32 : vector<3x128xf32>
    %34 = tpu.reciprocal %33 {approx = true} : vector<3x128xf32> -> vector<3x128xf32>
    %35 = arith.mulf %33, %34 : vector<3x128xf32>
    %cst_18 = arith.constant 2.000000e+00 : f32
    %36 = vector.broadcast %cst_18 : f32 to vector<3x128xf32>
    %37 = arith.subf %36, %35 : vector<3x128xf32>
    %38 = arith.mulf %34, %37 : vector<3x128xf32>
    %39 = arith.mulf %32, %38 : vector<3x128xf32>
    %c0_19 = arith.constant 0 : index
    %c0_20 = arith.constant 0 : index
    %40 = vector.load %arg6[%c0_19, %c0_20] : memref<8x128xf32, #tpu.memory_space<vmem>>, vector<3x128xf32>
    tpu.vector_store %arg6[%c0_19, %c0_20], %39 {strides = array<i32>} : memref<8x128xf32, #tpu.memory_space<vmem>>, vector<3x128xf32>,
    %41 = arith.mulf %29, %38 : vector<3x128xf32>
    %c3_21 = arith.constant 3 : index
    %c0_22 = arith.constant 0 : index
    %42 = vector.load %arg6[%c3_21, %c0_22] : memref<8x128xf32, #tpu.memory_space<vmem>>, vector<3x128xf32>
    tpu.vector_store %arg6[%c3_21, %c0_22], %41 {strides = array<i32>} : memref<8x128xf32, #tpu.memory_space<vmem>>, vector<3x128xf32>,
    %cst_23 = arith.constant 0.000000e+00 : f32
    %43 = vector.broadcast %cst_23 : f32 to vector<2x128xf32>
    %c6 = arith.constant 6 : index
    %c0_24 = arith.constant 0 : index
    %44 = vector.load %arg6[%c6, %c0_24] : memref<8x128xf32, #tpu.memory_space<vmem>>, vector<2x128xf32>
    tpu.vector_store %arg6[%c6, %c0_24], %43 {strides = array<i32>} : memref<8x128xf32, #tpu.memory_space<vmem>>, vector<2x128xf32>,
    return
  }
  func.func @transform_0(%arg0: i32) -> (i32, i32) {
    %c0_i32 = arith.constant 0 : i32
    %c0_i32_0 = arith.constant 0 : i32
    return %arg0, %c0_i32 : i32, i32
  }
  func.func @transform_1(%arg0: i32) -> (i32, i32) {
    %c0_i32 = arith.constant 0 : i32
    %c0_i32_0 = arith.constant 0 : i32
    %c0_i32_1 = arith.constant 0 : i32
    return %c0_i32, %c0_i32_0 : i32, i32
  }
  func.func @transform_2(%arg0: i32) -> (i32, i32) {
    %c0_i32 = arith.constant 0 : i32
    %c0_i32_0 = arith.constant 0 : i32
    %c0_i32_1 = arith.constant 0 : i32
    return %c0_i32, %c0_i32_0 : i32, i32
  }
  func.func @transform_3(%arg0: i32) -> (i32, i32) {
    %c0_i32 = arith.constant 0 : i32
    %c0_i32_0 = arith.constant 0 : i32
    %c0_i32_1 = arith.constant 0 : i32
    return %c0_i32, %c0_i32_0 : i32, i32
  }
  func.func @transform_4(%arg0: i32) -> (i32, i32) {
    %c0_i32 = arith.constant 0 : i32
    %c0_i32_0 = arith.constant 0 : i32
    %c0_i32_1 = arith.constant 0 : i32
    return %c0_i32, %c0_i32_0 : i32, i32
  }
  func.func @transform_5(%arg0: i32) -> (i32, i32) {
    %c0_i32 = arith.constant 0 : i32
    %c0_i32_0 = arith.constant 0 : i32
    return %c0_i32, %arg0 : i32, i32
  }
}

</mosaic_0001>

<llo_original>
// kernel: tpu_custom_call.1
$region0: #{tpu_custom_call.1}
  #allocation0 [shape = 'u32[]', space=smem, size = 0x4, offset = 0x4, fixed_abs, tag = 'smem constant byte address 0x4 - core index']
  #allocation1 [shape = 'u32[144,128]{1,0:T(1,128)}', space=vmem, size = 0x12000, scoped, tag = 'internal scratch']
  %s0 = inlined_call_operand.vmem [shape: f32[256,16], index: 0, kind: input, shape index: {}]
  %s1 = inlined_call_operand.vmem [shape: f32[21,16], index: 1, kind: input, shape index: {}]
  %s2 = inlined_call_operand.vmem [shape: f32[36,21], index: 2, kind: input, shape index: {}]
  %s3 = inlined_call_operand.vmem [shape: f32[3,36], index: 3, kind: input, shape index: {}]
  %s4 = inlined_call_operand.vmem [shape: f32[36,5], index: 4, kind: input, shape index: {}]
  %s5 = inlined_call_operand.hbm [shape: f32[8,256], index: 5, kind: output, shape index: {}]
  %s6 = sld [smem:[#allocation0]]
  $region53: #{tpu_custom_call.1} parent=0
    _
  %s8 = ssub.s32 1, %s6
  %s9 = scalar_select 0, %s8, %s6
  $region1: #{tpu_custom_call.1} parent=0
    #allocation2 [shape = 'u8[8192]{0}', space=vmem, size = 0x2000, scoped, tag = 'output window, operand 0']
    #allocation3 [shape = 's32[2]{0}', space=sflag, size = 0x8, scoped, tag = 'scoped memory for tpu_custom_call.1']
    %10 = vsyncpa [#allocation3], 0
    %s11 = scalar_lea.sflag [#allocation3], 1
    %12 = vsyncpa %s11, 0
    loop: start=0, step=1, limit=4
    $region2: #{tpu_custom_call.1} parent=1 // loop_pre_header
      _
    $region3: #{tpu_custom_call.1} parent=1 // loop_header
      %s14 = sphi 0, %s18
      %p15 = scmp.ge.s32.totalorder %s14, 4
      %s24 = sphi 0, %s26
      %s27 = sphi 0, %s24
      %s28 = sphi 0, %s27
      %s44 = sphi 0, %s28
      %s48 = sphi 0, %s48
      %s50 = sphi 0, %s48
      %s51 = sphi 0, %s50
      %s65 = sphi 0, %s51
      %s69 = sphi 0, %s69
      %s71 = sphi 0, %s69
      %s72 = sphi 0, %s71
      %s86 = sphi 0, %s72
      %s90 = sphi 0, %s90
      %s92 = sphi 0, %s90
      %s93 = sphi 0, %s92
      %s107 = sphi 0, %s93
      %s111 = sphi 0, %s111
      %s113 = sphi 0, %s111
      %s114 = sphi 0, %s113
      %s128 = sphi 0, %s114
      %s134 = sphi 0, %s136
      %s137 = sphi 0, %s134
      %s138 = sphi 0, %s137
      %s154 = sphi 0, %s138
    $region4: #{tpu_custom_call.1} parent=1 // loop_header_branch
      %17 = sbr.rel (%p15) target = $region8
    $region5: #{tpu_custom_call.1} parent=1 // loop_body
      %s19 = ssub.s32 %s14, 1
      %s20 = ssub.s32 %s14, 2
      %s21 = sadd.s32 %s14, 1
      %s22 = ssub.s32 %s14, %s21
      %p23 = scmp.eq.s32.totalorder %s22, 0
      %s25 = sadd.s32 %s24, 1
      %s26 = scalar_select %p23, %s24, %s25
      %p29 = pneg %p23
      %p30 = scmp.eq.s32.totalorder %s14, 1
      %p31 = por %p29, %p30
      %p32 = scmp.ne.s32.totalorder %s24, %s27
      %p33 = scmp.eq.s32.totalorder %s14, 0
      %p34 = por %p32, %p33
      %p35 = scmp.ne.s32.totalorder %s24, %s27
      %p36 = scmp.eq.s32.totalorder %s19, 1
      %p37 = por %p35, %p36
      %p38 = scmp.ne.s32.totalorder %s27, %s28
      %p39 = scmp.eq.s32.totalorder %s19, 0
      %p40 = por %p38, %p39
      %p41 = scmp.ne.s32.totalorder %s27, %s28
      %p42 = scmp.eq.s32.totalorder %s20, 1
      %p43 = por %p41, %p42
      %p45 = scmp.ne.s32.totalorder %s28, %s44
      %p46 = scmp.eq.s32.totalorder %s20, 0
      %p47 = por %p45, %p46
      %s49 = sadd.s32 %s48, 1
      %p52 = scmp.eq.s32.totalorder %s14, 1
      %p53 = scmp.ne.s32.totalorder %s48, %s50
      %p54 = scmp.eq.s32.totalorder %s14, 0
      %p55 = por %p53, %p54
      %p56 = scmp.ne.s32.totalorder %s48, %s50
      %p57 = scmp.eq.s32.totalorder %s19, 1
      %p58 = por %p56, %p57
      %p59 = scmp.ne.s32.totalorder %s50, %s51
      %p60 = scmp.eq.s32.totalorder %s19, 0
      %p61 = por %p59, %p60
      %p62 = scmp.ne.s32.totalorder %s50, %s51
      %p63 = scmp.eq.s32.totalorder %s20, 1
      %p64 = por %p62, %p63
      %p66 = scmp.ne.s32.totalorder %s51, %s65
      %p67 = scmp.eq.s32.totalorder %s20, 0
      %p68 = por %p66, %p67
      %s70 = sadd.s32 %s69, 1
      %p73 = scmp.eq.s32.totalorder %s14, 1
      %p74 = scmp.ne.s32.totalorder %s69, %s71
      %p75 = scmp.eq.s32.totalorder %s14, 0
      %p76 = por %p74, %p75
      %p77 = scmp.ne.s32.totalorder %s69, %s71
      %p78 = scmp.eq.s32.totalorder %s19, 1
      %p79 = por %p77, %p78
      %p80 = scmp.ne.s32.totalorder %s71, %s72
      %p81 = scmp.eq.s32.totalorder %s19, 0
      %p82 = por %p80, %p81
      %p83 = scmp.ne.s32.totalorder %s71, %s72
      %p84 = scmp.eq.s32.totalorder %s20, 1
      %p85 = por %p83, %p84
      %p87 = scmp.ne.s32.totalorder %s72, %s86
      %p88 = scmp.eq.s32.totalorder %s20, 0
      %p89 = por %p87, %p88
      %s91 = sadd.s32 %s90, 1
      %p94 = scmp.eq.s32.totalorder %s14, 1
      %p95 = scmp.ne.s32.totalorder %s90, %s92
      %p96 = scmp.eq.s32.totalorder %s14, 0
      %p97 = por %p95, %p96
      %p98 = scmp.ne.s32.totalorder %s90, %s92
      %p99 = scmp.eq.s32.totalorder %s19, 1
      %p100 = por %p98, %p99
      %p101 = scmp.ne.s32.totalorder %s92, %s93
      %p102 = scmp.eq.s32.totalorder %s19, 0
      %p103 = por %p101, %p102
      %p104 = scmp.ne.s32.totalorder %s92, %s93
      %p105 = scmp.eq.s32.totalorder %s20, 1
      %p106 = por %p104, %p105
      %p108 = scmp.ne.s32.totalorder %s93, %s107
      %p109 = scmp.eq.s32.totalorder %s20, 0
      %p110 = por %p108, %p109
      %s112 = sadd.s32 %s111, 1
      %p115 = scmp.eq.s32.totalorder %s14, 1
      %p116 = scmp.ne.s32.totalorder %s111, %s113
      %p117 = scmp.eq.s32.totalorder %s14, 0
      %p118 = por %p116, %p117
      %p119 = scmp.ne.s32.totalorder %s111, %s113
      %p120 = scmp.eq.s32.totalorder %s19, 1
      %p121 = por %p119, %p120
      %p122 = scmp.ne.s32.totalorder %s113, %s114
      %p123 = scmp.eq.s32.totalorder %s19, 0
      %p124 = por %p122, %p123
      %p125 = scmp.ne.s32.totalorder %s113, %s114
      %p126 = scmp.eq.s32.totalorder %s20, 1
      %p127 = por %p125, %p126
      %p129 = scmp.ne.s32.totalorder %s114, %s128
      %p130 = scmp.eq.s32.totalorder %s20, 0
      %p131 = por %p129, %p130
      %s132 = ssub.s32 %s14, %s21
      %p133 = scmp.eq.s32.totalorder %s132, 0
      %s135 = sadd.s32 %s134, 1
      %s136 = scalar_select %p133, %s134, %s135
      %p139 = pneg %p133
      %p140 = scmp.eq.s32.totalorder %s14, 1
      %p141 = por %p139, %p140
      %p142 = scmp.ne.s32.totalorder %s134, %s137
      %p143 = scmp.eq.s32.totalorder %s14, 0
      %p144 = por %p142, %p143
      %p145 = scmp.ne.s32.totalorder %s134, %s137
      %p146 = scmp.eq.s32.totalorder %s19, 1
      %p147 = por %p145, %p146
      %p148 = scmp.ne.s32.totalorder %s137, %s138
      %p149 = scmp.eq.s32.totalorder %s19, 0
      %p150 = por %p148, %p149
      %p151 = scmp.ne.s32.totalorder %s137, %s138
      %p152 = scmp.eq.s32.totalorder %s20, 1
      %p153 = por %p151, %p152
      %p155 = scmp.ne.s32.totalorder %s138, %s154
      %p156 = scmp.eq.s32.totalorder %s20, 0
      %p157 = por %p155, %p156
      %p158 = scmp.le.s32.totalorder 1, %s14
      %p159 = scmp.lt.s32.totalorder %s14, 3
      %p160 = pnand %p158, %p159
      %p161 = pneg %p160
      // Predicated region
      $region9: #{tpu_custom_call.1} parent=5 // pred_check
        _
      $region10: #{tpu_custom_call.1} parent=5 // pred_check_branch
        %163 = sbr.rel (%p160) target = $region12
      $region11: #{tpu_custom_call.1} parent=5 // pred_region
        %s164 = ssub.s32 %s14, 1
        // Predicated region
        $region13: #{tpu_custom_call.1} parent=11 // pred_check
          %p165 = pneg %p61
        $region14: #{tpu_custom_call.1} parent=11 // pred_check_branch
          %167 = sbr.rel (%p165) target = $region16
        $region15: #{tpu_custom_call.1} parent=11 // pred_region
          _
        $region16: #{tpu_custom_call.1} parent=11 // pred_fallthru
          _
        // Predicated region
        $region17: #{tpu_custom_call.1} parent=11 // pred_check
          %p168 = pneg %p82
        $region18: #{tpu_custom_call.1} parent=11 // pred_check_branch
          %170 = sbr.rel (%p168) target = $region20
        $region19: #{tpu_custom_call.1} parent=11 // pred_region
          _
        $region20: #{tpu_custom_call.1} parent=11 // pred_fallthru
          _
        // Predicated region
        $region21: #{tpu_custom_call.1} parent=11 // pred_check
          %p171 = pneg %p103
        $region22: #{tpu_custom_call.1} parent=11 // pred_check_branch
          %173 = sbr.rel (%p171) target = $region24
        $region23: #{tpu_custom_call.1} parent=11 // pred_region
          _
        $region24: #{tpu_custom_call.1} parent=11 // pred_fallthru
          _
        // Predicated region
        $region25: #{tpu_custom_call.1} parent=11 // pred_check
          %p174 = pneg %p124
        $region26: #{tpu_custom_call.1} parent=11 // pred_check_branch
          %176 = sbr.rel (%p174) target = $region28
        $region27: #{tpu_custom_call.1} parent=11 // pred_region
          _
        $region28: #{tpu_custom_call.1} parent=11 // pred_fallthru
          _
      $region12: #{tpu_custom_call.1} parent=5 // pred_fallthru
        _
      %p177 = scmp.lt.s32.totalorder %s14, 2
      // Predicated region
      $region29: #{tpu_custom_call.1} parent=5 // pred_check
        %p178 = pneg %p177
      $region30: #{tpu_custom_call.1} parent=5 // pred_check_branch
        %180 = sbr.rel (%p178) target = $region32
      $region31: #{tpu_custom_call.1} parent=5 // pred_region
        // Predicated region
        $region33: #{tpu_custom_call.1} parent=31 // pred_check
          %p181 = pneg %p34
        $region34: #{tpu_custom_call.1} parent=31 // pred_check_branch
          %183 = sbr.rel (%p181) target = $region36
        $region35: #{tpu_custom_call.1} parent=31 // pred_region
          %s184 = smul.u32 16, %s14
          %p185 = scmp.lt.s32.totalorder %s184, 31
          %s186 = scalar_select %p185, %s184, 31
          %s187 = smul.addr %s186, 8
          %s188 = scalar_lea.vmem %s0, %s187
          %s189 = smul.u32 16, %s14
        $region36: #{tpu_custom_call.1} parent=31 // pred_fallthru
          _
      $region32: #{tpu_custom_call.1} parent=5 // pred_fallthru
        _
      %p190 = scmp.le.s32.totalorder 1, %s14
      %p191 = scmp.lt.s32.totalorder %s14, 3
      %p192 = pnand %p190, %p191
      %p193 = pneg %p192
      // Predicated region
      $region37: #{tpu_custom_call.1} parent=5 // pred_check
        _
      $region38: #{tpu_custom_call.1} parent=5 // pred_check_branch
        %195 = sbr.rel (%p192) target = $region40
      $region39: #{tpu_custom_call.1} parent=5 // pred_region
        %s196 = ssub.s32 %s14, 1
        %s197 = smul.u32 16, %s19
        %p198 = scmp.lt.s32.totalorder %s197, 31
        %s199 = scalar_select %p198, %s197, 31
        %s200 = smul.addr %s199, 8
        %s201 = scalar_lea.vmem %s0, %s200
        %p202 = pneg %p40
        %p203 = pneg %p37
        %p204 = pneg %p61
        %p205 = pneg %p58
        %p206 = pneg %p82
        %p207 = pneg %p79
        %p208 = pneg %p103
        %p209 = pneg %p100
        %p210 = pneg %p124
        %p211 = pneg %p121
        %p212 = pneg %p150
        %p213 = pneg %p147
        %s214 = sand.u32 %s137, 1
        %s215 = scalar_lea.sflag [#allocation3], %s214
        %s216 = sand.u32 %s137, 1
        %s217 = smul.addr %s216, 8
        %s218 = scalar_lea.vmem [#allocation2], %s217
        %s219 = smul.u32 16, %s19
        %p220 = scmp.lt.s32.totalorder %s219, 31
        %s221 = scalar_select %p220, %s219, 31
        %s222 = smul.addr %s221, 8
        %s223 = scalar_lea.vmem %s0, %s222
        %s224 = smul.u32 16, %s19
        %v225 = vld [vmem:[%s4] sm:$0xff]
        %v226 = vld [vmem:[%s4 + $0x8] sm:$0xff]
        %v227 = vld [vmem:[%s4 + $0x10] sm:$0x1f]
        %v228 = vld [vmem:[%s4 + $0x10] sm:$0xff]
        %v229 = vld [vmem:[%s4 + $0x18] sm:$0xff]
        %v230 = vld [vmem:[%s4 + $0x20] sm:$0xf]
        %v231 = vld [vmem:[%s4] sm:$0x7]
        %v232 = vld [vmem:[%s1] sm:$0xff]
        %v233 = vld [vmem:[%s1 + $0x8] sm:$0xff]
        %v234 = vld [vmem:[%s1 + $0x10] sm:$0x1f]
        %v235 = vld [vmem:[%s223] sm:$0xff]
        %v236 = vld [vmem:[%s223 + $0x8] sm:$0xff]
        %v237 = vld [vmem:[%s223 + $0x10] sm:$0xff]
        %v238 = vld [vmem:[%s223 + $0x18] sm:$0xff]
        %v239 = vld [vmem:[%s223 + $0x20] sm:$0xff]
        %v240 = vld [vmem:[%s223 + $0x28] sm:$0xff]
        %v241 = vld [vmem:[%s223 + $0x30] sm:$0xff]
        %v242 = vld [vmem:[%s223 + $0x38] sm:$0xff]
        %v243 = vld [vmem:[%s223 + $0x40] sm:$0xff]
        %v244 = vld [vmem:[%s223 + $0x48] sm:$0xff]
        %v245 = vld [vmem:[%s223 + $0x50] sm:$0xff]
        %v246 = vld [vmem:[%s223 + $0x58] sm:$0xff]
        %v247 = vld [vmem:[%s223 + $0x60] sm:$0xff]
        %v248 = vld [vmem:[%s223 + $0x68] sm:$0xff]
        %v249 = vld [vmem:[%s223 + $0x70] sm:$0xff]
        %v250 = vld [vmem:[%s223 + $0x78] sm:$0xff]
        %252 = vset.pattern.permute.xlu0 0
        %253 = vperm.xlu0 %252, %v225
        %v254 = vpop.permute.xlu0 %253
        %257 = vset.pattern.permute.xlu0 0
        %258 = vperm.xlu0 %257, %v226
        %v259 = vpop.permute.xlu0 %258
        %262 = vset.pattern.permute.xlu0 0
        %263 = vperm.xlu0 %262, %v227
        %v264 = vpop.permute.xlu0 %263
        %vm266 = vcmask 130048
        %v268 = vsel %vm266, %v232, 0
        %v271 = vsel %vm266, %v233, 0
        %v274 = vsel %vm266, %v234, 0
        %v277 = vsel %vm266, %v235, 0
        %v280 = vsel %vm266, %v236, 0
        %v283 = vsel %vm266, %v237, 0
        %v286 = vsel %vm266, %v238, 0
        %v289 = vsel %vm266, %v239, 0
        %v292 = vsel %vm266, %v240, 0
        %v295 = vsel %vm266, %v241, 0
        %v298 = vsel %vm266, %v242, 0
        %v301 = vsel %vm266, %v243, 0
        %v304 = vsel %vm266, %v244, 0
        %v307 = vsel %vm266, %v245, 0
        %v310 = vsel %vm266, %v246, 0
        %v313 = vsel %vm266, %v247, 0
        %v316 = vsel %vm266, %v248, 0
        %v319 = vsel %vm266, %v249, 0
        %v322 = vsel %vm266, %v250, 0
        %324 = vmatprep.subr.mxu0 0.0
        %325 = vmatpush1.xpose.msra.mxu0 %v277
        %326 = vmatprep.subr.mxu0 0.0
        %327 = vmatpush1.xpose.msra.mxu0 %v280
        %328 = vmatprep.subr.mxu0 0.0
        %329 = vmatpush1.xpose.msra.mxu0 %v283
        %330 = vmatprep.subr.mxu0 0.0
        %331 = vmatpush1.xpose.msra.mxu0 %v286
        %332 = vmatprep.subr.mxu0 0.0
        %333 = vmatpush1.xpose.msra.mxu0 %v289
        %334 = vmatprep.subr.mxu0 0.0
        %335 = vmatpush1.xpose.msra.mxu0 %v292
        %336 = vmatprep.subr.mxu0 0.0
        %337 = vmatpush1.xpose.msra.mxu0 %v295
        %338 = vmatprep.subr.mxu0 0.0
        %339 = vmatpush1.xpose.msra.mxu0 %v298
        %340 = vmatprep.subr.mxu0 0.0
        %341 = vmatpush1.xpose.msra.mxu0 %v301
        %342 = vmatprep.subr.mxu0 0.0
        %343 = vmatpush1.xpose.msra.mxu0 %v304
        %344 = vmatprep.subr.mxu0 0.0
        %345 = vmatpush1.xpose.msra.mxu0 %v307
        %346 = vmatprep.subr.mxu0 0.0
        %347 = vmatpush1.xpose.msra.mxu0 %v310
        %348 = vmatprep.subr.mxu0 0.0
        %349 = vmatpush1.xpose.msra.mxu0 %v313
        %350 = vmatprep.subr.mxu0 0.0
        %351 = vmatpush1.xpose.msra.mxu0 %v316
        %352 = vmatprep.subr.mxu0 0.0
        %353 = vmatpush1.xpose.msra.mxu0 %v319
        %354 = vmatprep.subr.mxu0 0.0
        %355 = vmatpush1.xpose.msra.mxu0 %v322
        %356 = vmatprep.subr.mxu0 0.0
        %357 = vmatpush1.xpose.msra.mxu0 0.0
        %358 = vmatprep.subr.mxu0 0.0
        %359 = vmatpush1.xpose.msra.mxu0 0.0
        %360 = vmatprep.subr.mxu0 0.0
        %361 = vmatpush1.xpose.msra.mxu0 0.0
        %362 = vmatprep.subr.mxu0 0.0
        %363 = vmatpush1.xpose.msra.mxu0 0.0
        %364 = vmatprep.subr.mxu0 0.0
        %365 = vmatpush1.xpose.msra.mxu0 0.0
        %366 = vmatprep.subr.mxu0 0.0
        %367 = vmatpush1.xpose.msra.mxu0 0.0
        %368 = vmatprep.subr.mxu0 0.0
        %369 = vmatpush1.xpose.msra.mxu0 0.0
        %370 = vmatprep.subr.mxu0 0.0
        %371 = vmatpush1.xpose.msra.mxu0 0.0
        %372 = vmatprep.subr.mxu0 0.0
        %373 = vmatpush1.xpose.msra.mxu0 0.0
        %374 = vmatprep.subr.mxu0 0.0
        %375 = vmatpush1.xpose.msra.mxu0 0.0
        %376 = vmatprep.subr.mxu0 0.0
        %377 = vmatpush1.xpose.msra.mxu0 0.0
        %378 = vmatprep.subr.mxu0 0.0
        %379 = vmatpush1.xpose.msra.mxu0 0.0
        %380 = vmatprep.subr.mxu0 0.0
        %381 = vmatpush1.xpose.msra.mxu0 0.0
        %382 = vmatprep.subr.mxu0 0.0
        %383 = vmatpush1.xpose.msra.mxu0 0.0
        %384 = vmatprep.subr.mxu0 0.0
        %385 = vmatpush1.xpose.msra.mxu0 0.0
        %386 = vmatprep.subr.mxu0 0.0
        %387 = vmatpush1.xpose.msra.mxu0 0.0
        %388 = vmatprep.mubr.f32.mxu0 0.0
        %389 = vmatmul.mubr.f32.gmra.mrb[0].mxu0 %v268
        %v390 = vpop.f32.mrb[0].mxu0
        %v391 = vadd.f32 %v254, %v390
        %v392 = vpop.f32.mrb[0].mxu0
        %393 = vmatprep.mubr.f32.mxu0 0.0
        %394 = vmatmul.mubr.f32.gmra.mrb[0].mxu0 %v271
        %v395 = vpop.f32.mrb[0].mxu0
        %v396 = vadd.f32 %v259, %v395
        %v397 = vpop.f32.mrb[0].mxu0
        %398 = vmatprep.mubr.f32.mxu0 0.0
        %399 = vmatmul.mubr.f32.gmra.mrb[0].mxu0 %v274
        %v400 = vpop.f32.mrb[0].mxu0
        %v401 = vadd.f32 %v264, %v400
        %v402 = vpop.f32.mrb[0].mxu0
        %403 = vdwg.mxu0
        %v404 = vmax.f32 %v391, 0.0
        %v405 = vmax.f32 %v396, 0.0
        %v406 = vmax.f32 %v401, 0.0
        %v407 = vld [vmem:[%s2] sm:$0xff]
        %v408 = vld [vmem:[%s2 + $0x8] sm:$0xff]
        %v409 = vld [vmem:[%s2 + $0x10] sm:$0xff]
        %v410 = vld [vmem:[%s2 + $0x18] sm:$0xff]
        %v411 = vld [vmem:[%s2 + $0x20] sm:$0xf]
        %412 = vset.pattern.permute.xlu0 1
        %413 = vperm.xlu0 %412, %v225
        %v414 = vpop.permute.xlu0 %413
        %416 = vset.pattern.permute.xlu0 1
        %417 = vperm.xlu0 %416, %v226
        %v418 = vpop.permute.xlu0 %417
        %421 = vset.pattern.permute.xlu0 1
        %422 = vperm.xlu0 %421, %v228
        %v423 = vpop.permute.xlu0 %422
        %426 = vset.pattern.permute.xlu0 1
        %427 = vperm.xlu0 %426, %v229
        %v428 = vpop.permute.xlu0 %427
        %431 = vset.pattern.permute.xlu0 1
        %432 = vperm.xlu0 %431, %v230
        %v433 = vpop.permute.xlu0 %432
        %vm435 = vcmask 171008
        %v437 = vsel %vm435, %v407, 0
        %v440 = vsel %vm435, %v408, 0
        %v443 = vsel %vm435, %v409, 0
        %v446 = vsel %vm435, %v410, 0
        %v449 = vsel %vm435, %v411, 0
        %vm451 = vcmask 1044480
        %v453 = vsel %vm451, %v406, 0
        %455 = vmatprep.subr.mxu0 0.0
        %456 = vmatpush1.msra.mxu0 %v404
        %457 = vmatprep.subr.mxu0 0.0
        %458 = vmatpush1.msra.mxu0 %v405
        %459 = vmatprep.subr.mxu0 0.0
        %460 = vmatpush1.msra.mxu0 %v453
        %461 = vmatprep.subr.mxu0 0.0
        %462 = vmatpush1.msra.mxu0 0.0
        %463 = vmatprep.subr.mxu0 0.0
        %464 = vmatpush1.msra.mxu0 0.0
        %465 = vmatprep.subr.mxu0 0.0
        %466 = vmatpush1.msra.mxu0 0.0
        %467 = vmatprep.subr.mxu0 0.0
        %468 = vmatpush1.msra.mxu0 0.0
        %469 = vmatprep.subr.mxu0 0.0
        %470 = vmatpush1.msra.mxu0 0.0
        %471 = vmatprep.subr.mxu0 0.0
        %472 = vmatpush1.msra.mxu0 0.0
        %473 = vmatprep.subr.mxu0 0.0
        %474 = vmatpush1.msra.mxu0 0.0
        %475 = vmatprep.subr.mxu0 0.0
        %476 = vmatpush1.msra.mxu0 0.0
        %477 = vmatprep.subr.mxu0 0.0
        %478 = vmatpush1.msra.mxu0 0.0
        %479 = vmatprep.subr.mxu0 0.0
        %480 = vmatpush1.msra.mxu0 0.0
        %481 = vmatprep.subr.mxu0 0.0
        %482 = vmatpush1.msra.mxu0 0.0
        %483 = vmatprep.subr.mxu0 0.0
        %484 = vmatpush1.msra.mxu0 0.0
        %485 = vmatprep.subr.mxu0 0.0
        %486 = vmatpush1.msra.mxu0 0.0
        %487 = vmatprep.subr.mxu0 0.0
        %488 = vmatpush1.msra.mxu0 0.0
        %489 = vmatprep.subr.mxu0 0.0
        %490 = vmatpush1.msra.mxu0 0.0
        %491 = vmatprep.subr.mxu0 0.0
        %492 = vmatpush1.msra.mxu0 0.0
        %493 = vmatprep.subr.mxu0 0.0
        %494 = vmatpush1.msra.mxu0 0.0
        %495 = vmatprep.subr.mxu0 0.0
        %496 = vmatpush1.msra.mxu0 0.0
        %497 = vmatprep.subr.mxu0 0.0
        %498 = vmatpush1.msra.mxu0 0.0
        %499 = vmatprep.subr.mxu0 0.0
        %500 = vmatpush1.msra.mxu0 0.0
        %501 = vmatprep.subr.mxu0 0.0
        %502 = vmatpush1.msra.mxu0 0.0
        %503 = vmatprep.subr.mxu0 0.0
        %504 = vmatpush1.msra.mxu0 0.0
        %505 = vmatprep.subr.mxu0 0.0
        %506 = vmatpush1.msra.mxu0 0.0
        %507 = vmatprep.subr.mxu0 0.0
        %508 = vmatpush1.msra.mxu0 0.0
        %509 = vmatprep.subr.mxu0 0.0
        %510 = vmatpush1.msra.mxu0 0.0
        %511 = vmatprep.subr.mxu0 0.0
        %512 = vmatpush1.msra.mxu0 0.0
        %513 = vmatprep.subr.mxu0 0.0
        %514 = vmatpush1.msra.mxu0 0.0
        %515 = vmatprep.subr.mxu0 0.0
        %516 = vmatpush1.msra.mxu0 0.0
        %517 = vmatprep.subr.mxu0 0.0
        %518 = vmatpush1.msra.mxu0 0.0
        %519 = vmatprep.mubr.f32.mxu0 0.0
        %520 = vmatmul.mubr.f32.gmra.mrb[0].mxu0 %v437
        %v521 = vpop.f32.mrb[0].mxu0
        %v522 = vadd.f32 %v414, %v521
        %v523 = vpop.f32.mrb[0].mxu0
        %524 = vmatprep.mubr.f32.mxu0 0.0
        %525 = vmatmul.mubr.f32.gmra.mrb[0].mxu0 %v440
        %v526 = vpop.f32.mrb[0].mxu0
        %v527 = vadd.f32 %v418, %v526
        %v528 = vpop.f32.mrb[0].mxu0
        %529 = vmatprep.mubr.f32.mxu0 0.0
        %530 = vmatmul.mubr.f32.gmra.mrb[0].mxu0 %v443
        %v531 = vpop.f32.mrb[0].mxu0
        %v532 = vadd.f32 %v423, %v531
        %v533 = vpop.f32.mrb[0].mxu0
        %534 = vmatprep.mubr.f32.mxu0 0.0
        %535 = vmatmul.mubr.f32.gmra.mrb[0].mxu0 %v446
        %v536 = vpop.f32.mrb[0].mxu0
        %v537 = vadd.f32 %v428, %v536
        %v538 = vpop.f32.mrb[0].mxu0
        %539 = vmatprep.mubr.f32.mxu0 0.0
        %540 = vmatmul.mubr.f32.gmra.mrb[0].mxu0 %v449
        %v541 = vpop.f32.mrb[0].mxu0
        %v542 = vadd.f32 %v433, %v541
        %v543 = vpop.f32.mrb[0].mxu0
        %544 = vdwg.mxu0
        %v545 = vmax.f32 %v522, 0.0
        %v546 = vmax.f32 %v527, 0.0
        %v547 = vmax.f32 %v532, 0.0
        %v548 = vmax.f32 %v537, 0.0
        %v549 = vmax.f32 %v542, 0.0
        %v550 = vld [vmem:[%s3] sm:$0x7]
        %552 = vset.pattern.permute.xlu0 2
        %553 = vperm.xlu0 %552, %v231
        %v554 = vpop.permute.xlu0 %553
        %vm556 = vcmask 293888
        %v558 = vsel %vm556, %v550, 0
        %vm560 = vcmask 1043456
        %v562 = vsel %vm560, %v549, 0
        %564 = vmatprep.subr.mxu0 0.0
        %565 = vmatpush1.msra.mxu0 %v545
        %566 = vmatprep.subr.mxu0 0.0
        %567 = vmatpush1.msra.mxu0 %v546
        %568 = vmatprep.subr.mxu0 0.0
        %569 = vmatpush1.msra.mxu0 %v547
        %570 = vmatprep.subr.mxu0 0.0
        %571 = vmatpush1.msra.mxu0 %v548
        %572 = vmatprep.subr.mxu0 0.0
        %573 = vmatpush1.msra.mxu0 %v562
        %574 = vmatprep.subr.mxu0 0.0
        %575 = vmatpush1.msra.mxu0 0.0
        %576 = vmatprep.subr.mxu0 0.0
        %577 = vmatpush1.msra.mxu0 0.0
        %578 = vmatprep.subr.mxu0 0.0
        %579 = vmatpush1.msra.mxu0 0.0
        %580 = vmatprep.subr.mxu0 0.0
        %581 = vmatpush1.msra.mxu0 0.0
        %582 = vmatprep.subr.mxu0 0.0
        %583 = vmatpush1.msra.mxu0 0.0
        %584 = vmatprep.subr.mxu0 0.0
        %585 = vmatpush1.msra.mxu0 0.0
        %586 = vmatprep.subr.mxu0 0.0
        %587 = vmatpush1.msra.mxu0 0.0
        %588 = vmatprep.subr.mxu0 0.0
        %589 = vmatpush1.msra.mxu0 0.0
        %590 = vmatprep.subr.mxu0 0.0
        %591 = vmatpush1.msra.mxu0 0.0
        %592 = vmatprep.subr.mxu0 0.0
        %593 = vmatpush1.msra.mxu0 0.0
        %594 = vmatprep.subr.mxu0 0.0
        %595 = vmatpush1.msra.mxu0 0.0
        %596 = vmatprep.subr.mxu0 0.0
        %597 = vmatpush1.msra.mxu0 0.0
        %598 = vmatprep.subr.mxu0 0.0
        %599 = vmatpush1.msra.mxu0 0.0
        %600 = vmatprep.subr.mxu0 0.0
        %601 = vmatpush1.msra.mxu0 0.0
        %602 = vmatprep.subr.mxu0 0.0
        %603 = vmatpush1.msra.mxu0 0.0
        %604 = vmatprep.subr.mxu0 0.0
        %605 = vmatpush1.msra.mxu0 0.0
        %606 = vmatprep.subr.mxu0 0.0
        %607 = vmatpush1.msra.mxu0 0.0
        %608 = vmatprep.subr.mxu0 0.0
        %609 = vmatpush1.msra.mxu0 0.0
        %610 = vmatprep.subr.mxu0 0.0
        %611 = vmatpush1.msra.mxu0 0.0
        %612 = vmatprep.subr.mxu0 0.0
        %613 = vmatpush1.msra.mxu0 0.0
        %614 = vmatprep.subr.mxu0 0.0
        %615 = vmatpush1.msra.mxu0 0.0
        %616 = vmatprep.subr.mxu0 0.0
        %617 = vmatpush1.msra.mxu0 0.0
        %618 = vmatprep.subr.mxu0 0.0
        %619 = vmatpush1.msra.mxu0 0.0
        %620 = vmatprep.subr.mxu0 0.0
        %621 = vmatpush1.msra.mxu0 0.0
        %622 = vmatprep.subr.mxu0 0.0
        %623 = vmatpush1.msra.mxu0 0.0
        %624 = vmatprep.subr.mxu0 0.0
        %625 = vmatpush1.msra.mxu0 0.0
        %626 = vmatprep.subr.mxu0 0.0
        %627 = vmatpush1.msra.mxu0 0.0
        %628 = vmatprep.mubr.f32.mxu0 0.0
        %629 = vmatmul.mubr.f32.gmra.mrb[0].mxu0 %v558
        %v630 = vpop.f32.mrb[0].mxu0
        %v631 = vadd.f32 %v554, %v630
        %v632 = vpop.f32.mrb[0].mxu0
        %633 = vdwg.mxu0
        %634 = vset.pattern.permute.xlu0 3
        %635 = vperm.xlu0 %634, %v231
        %v636 = vpop.permute.xlu0 %635
        %v638 = vsub.f32 %v631, %v636
        %639 = vset.pattern.permute.xlu0 4
        %640 = vperm.xlu0 %639, %v231
        %v641 = vpop.permute.xlu0 %640
        %v643 = vsub.f32 %v631, %v641
        %v644 = vmul.f32 %v638, %v638
        %v645 = vadd.f32 %v644, 1.0
        %v646 = vmul.f32 %v643, %v643
        %v647 = vadd.f32 %v646, 1.0
        %v648 = vadd.f32 %v645, %v647
        %v649 = vrcp.pop %v648
        %v650 = vmul.f32 %v648, %v649
        %v651 = vsub.f32 2.0, %v650
        %v652 = vmul.f32 %v649, %v651
        %v653 = vmul.f32 %v647, %v652
        %654 = vst [vmem:[%s218] sm:$0x7] %v653
        %v655 = vmul.f32 %v645, %v652
        %656 = vst [vmem:[%s218 + $0x3] sm:$0x7] %v655
        %657 = vst [vmem:[%s218 + $0x6] sm:$0x3] 0.0
        %s658 = sand.u32 %s137, 1
        %s659 = scalar_lea.sflag [#allocation3], %s658
        %s660 = sand.u32 %s137, 1
        %s661 = smul.addr %s660, 8
        %s662 = scalar_lea.vmem [#allocation2], %s661
        // Predicated region
        $region41: #{tpu_custom_call.1} parent=39 // pred_check
          %p663 = pneg %p147
        $region42: #{tpu_custom_call.1} parent=39 // pred_check_branch
          %665 = sbr.rel (%p663) target = $region44
        $region43: #{tpu_custom_call.1} parent=39 // pred_region
          %s667 = ssub.s32 128, 128
          %668 = vsyncadd %s659, %s667
          %s669 = smul.addr %s19, 128
          %s670 = scalar_lea.hbm %s5, %s669
          %s672 = sshll.u32 %s662, 4
          %s673 = int_to_ptr.vmem [resolvable:$true] %s672
          %675 = dma.vmem_to_hbm [thread:$0]  %s673, 128, %s670, %s659
        $region44: #{tpu_custom_call.1} parent=39 // pred_fallthru
          _
      $region40: #{tpu_custom_call.1} parent=5 // pred_fallthru
        _
      %p676 = scmp.le.s32.totalorder 2, %s14
      // Predicated region
      $region45: #{tpu_custom_call.1} parent=5 // pred_check
        %p677 = pneg %p676
      $region46: #{tpu_custom_call.1} parent=5 // pred_check_branch
        %679 = sbr.rel (%p677) target = $region48
      $region47: #{tpu_custom_call.1} parent=5 // pred_region
        %s680 = ssub.s32 %s14, 2
        // Predicated region
        $region49: #{tpu_custom_call.1} parent=47 // pred_check
          %p681 = pneg %p153
        $region50: #{tpu_custom_call.1} parent=47 // pred_check_branch
          %683 = sbr.rel (%p681) target = $region52
        $region51: #{tpu_custom_call.1} parent=47 // pred_region
          %s684 = sand.u32 %s138, 1
          %s685 = scalar_lea.sflag [#allocation3], %s684
          %s686 = sand.u32 %s138, 1
          %s687 = smul.addr %s686, 8
          %s688 = scalar_lea.vmem [#allocation2], %s687
          %689 = dma.done %s685, 128
        $region52: #{tpu_custom_call.1} parent=47 // pred_fallthru
          _
      $region48: #{tpu_custom_call.1} parent=5 // pred_fallthru
        _
    $region6: #{tpu_custom_call.1} parent=1 // loop_footer
      %s18 = sadd.s32 1, %s14
    $region7: #{tpu_custom_call.1} parent=1 // loop_footer_branch
      %13 = sbr.rel target = $region3
    $region8: #{tpu_custom_call.1} parent=1 // loop_exit
      _
    %690 = vsyncpa [#allocation3], 1
    %s691 = scalar_lea.sflag [#allocation3], 1
    %692 = vsyncpa %s691, 1

</llo_original>
